<compile_context>
chip_gen: v6e
topology: v6e:2x2x1
jax: 0.10.0
libtpu: 0.0.40
codegen_flags: <defaults>
</compile_context>

<pallas_src>
import functools

import jax
import jax.numpy as jnp
import numpy as np
from jax import lax
from jax.experimental import pallas as pl
from jax.experimental.pallas import tpu as pltpu


def _softplus(x):
    # numerically stable softplus, matches torch.nn.functional.softplus
    return jnp.logaddexp(x, 0.0)


def _log_g(x):
    # log_g(x) = log(relu(x) + 0.5) if x >= 0 else -softplus(-x)   (reference only)
    return jnp.where(x >= 0, jnp.log(jnp.maximum(x, 0.0) + 0.5), -_softplus(-x))


def _minlstm_chunk_kernel(x_ref, w_ref, b_ref, o_ref, h_ref, coef_ref, term2_ref,
                          *, chunk_t, bb, hp, d):
    """One grid step == one (batch_tile, chunk_t-timestep) tile."""
    c = pl.program_id(1)                      # chunk index (sequential axis)

    @pl.when(c == 0)
    def _():
        # h_0 = 0 (matches torch.zeros in minLSTM.forward); re-init per batch tile.
        h_ref[...] = jnp.zeros_like(h_ref)

    # ---- chunk-parallel phase (everything that depends only on x) ----------------
    rows = chunk_t * bb
    xm = x_ref[...].reshape(rows, d).astype(w_ref.dtype)           # MXU operand dtype
    y = jnp.dot(xm, w_ref[...], preferred_element_type=jnp.float32) + b_ref[...]
    f_pre = y[:, 0 * hp:1 * hp]                                    # lane-aligned slices
    i_pre = y[:, 1 * hp:2 * hp]
    hh    = y[:, 2 * hp:3 * hp]

    # a = exp(-f_pre), b = exp(-i_pre)   (clamped to avoid f32 overflow)
    ea = jnp.exp(jnp.minimum(-f_pre, 80.0))
    eb = jnp.exp(jnp.minimum(-i_pre, 80.0))
    s = 2.0 + ea + eb
    coef = s * pl.reciprocal(1.0 + eb, approx=True)                # = 1 + exp(diff)
    sig = (1.0 + ea) * pl.reciprocal(s, approx=True)               # = sigmoid(diff)
    enh = jnp.exp(jnp.minimum(-hh, 80.0))
    g_hh = jnp.where(hh >= 0.0, hh + 0.5,
                     pl.reciprocal(1.0 + enh, approx=True))        # = exp(log_g(hh))
    term2 = sig * g_hh + 0.5 * coef                                # g(h)=h+0.5 folded

    coef_ref[...] = coef.reshape(chunk_t, bb, hp)
    term2_ref[...] = term2.reshape(chunk_t, bb, hp)

    # ---- serial recurrence: h_t = h_{t-1} * coef_t + term2_t  (one FMA per step) ---
    def step(t, h):
        h_new = h * coef_ref[t] + term2_ref[t]                     # dense (bb, hp) tiles
        o_ref[t] = h_new                                           # unmasked aligned store
        return h_new

    h_ref[...] = lax.fori_loop(0, chunk_t, step, h_ref[...],
                               unroll=min(8, chunk_t))


def minlstm_forward(x, wf, wi, wh, bf, bi, bh, *, chunk_t=512, batch_tile=8,
                    mxu_dtype=jnp.bfloat16, vmem_budget_bytes=40 * 1024 * 1024):
    """x: (B, T, D); weights stored as (D, H) = torch weight.T; biases (H,).
    Returns (B, T, H) float32, matching minLSTM.forward."""
    B, T, D = x.shape
    H = wf.shape[1]

    Hp = max(128, pl.cdiv(H, 128) * 128)          # per-gate width, lane (128) aligned
    Bb = pl.cdiv(max(8, int(batch_tile)), 8) * 8  # batch tile, sublane (8) aligned
    Bp = pl.cdiv(B, Bb) * Bb
    n_btiles = Bp // Bb

    dot_bytes = np.dtype(mxu_dtype).itemsize

    def vmem_est(t):
        blocks = 2 * (t * Bb * D * 4 + t * Bb * Hp * 4 + D * 3 * Hp * dot_bytes + 3 * Hp * 4)
        scratch = (Bb * Hp + 2 * t * Bb * Hp) * 4
        return blocks + scratch

    tc = max(1, min(int(chunk_t), T))
    while tc > 8 and vmem_est(tc) > vmem_budget_bytes:
        tc = pl.cdiv(tc, 2)
    n_chunks = pl.cdiv(T, tc)
    t_pad = n_chunks * tc

    # Time-major layout (t_pad, Bp, D); zero padding sits at the END of the last chunk /
    # batch tail so it never contaminates real outputs through the carried state.
    x_tm = jnp.transpose(x.astype(jnp.float32), (1, 0, 2))
    x_tm = jnp.pad(x_tm, ((0, t_pad - T), (0, Bp - B), (0, 0)))

    # Fused (D, 3*Hp) weight / (1, 3*Hp) bias; each gate owns a 128-aligned column block.
    def padw(w):
        return jnp.pad(w.astype(jnp.float32), ((0, 0), (0, Hp - H)))

    def padb(b):
        return jnp.pad(b.astype(jnp.float32), ((0, Hp - H),))

    w_cat = jnp.concatenate([padw(wf), padw(wi), padw(wh)], axis=1).astype(mxu_dtype)
    b_cat = jnp.concatenate([padb(bf), padb(bi), padb(bh)]).reshape(1, 3 * Hp)

    kernel = functools.partial(_minlstm_chunk_kernel, chunk_t=tc, bb=Bb, hp=Hp, d=D)

    out = pl.pallas_call(
        kernel,
        out_shape=jax.ShapeDtypeStruct((t_pad, Bp, Hp), jnp.float32),
        grid_spec=pltpu.PrefetchScalarGridSpec(
            num_scalar_prefetch=0,
            grid=(n_btiles, n_chunks),                      # (batch tiles, chunks)
            in_specs=[
                pl.BlockSpec((tc, Bb, D), lambda b, c: (c, b, 0)),       # x chunk tile
                pl.BlockSpec((D, 3 * Hp), lambda b, c: (0, 0)),          # fused weight
                pl.BlockSpec((1, 3 * Hp), lambda b, c: (0, 0)),          # fused bias
            ],
            out_specs=pl.BlockSpec((tc, Bb, Hp), lambda b, c: (c, b, 0)),
            scratch_shapes=[
                pltpu.VMEM((Bb, Hp), jnp.float32),          # recurrent state h
                pltpu.VMEM((tc, Bb, Hp), jnp.float32),      # coef   (x-only)
                pltpu.VMEM((tc, Bb, Hp), jnp.float32),      # term2  (x-only)
            ],
        ),
        compiler_params=pltpu.CompilerParams(
            # batch tiles are independent ("parallel": v7x megacore sharding);
            # chunks carry the recurrent state ("arbitrary": sequential).
            dimension_semantics=("parallel", "arbitrary"),
            vmem_limit_bytes=int(min(48 * 1024 * 1024,
                                     max(32 * 1024 * 1024, 2 * vmem_est(tc)))),
        ),
    )(x_tm, w_cat, b_cat)

    out = out[:T, :B, :H]                                   # drop time/batch/lane padding
    return jnp.transpose(out, (1, 0, 2))                    # (B, T, H)


def minlstm_ref(x, wf, wi, wh, bf, bi, bh):
    """Literal JAX transcription of the PyTorch module: per-timestep minLSTMCell +
    parallel_scan_log with the appended-zero F.pad(..., (0, 0, 0, 1)) variant."""
    B, T, D = x.shape
    H = wf.shape[1]
    h = jnp.zeros((B, 1, H), jnp.float32)
    outs = []
    for t in range(T):
        x_t = x[:, t:t + 1, :].astype(jnp.float32)             # (B, 1, D)
        f_lin = x_t @ wf + bf
        i_lin = x_t @ wi + bi
        h_lin = x_t @ wh + bh
        diff = _softplus(-f_lin) - _softplus(-i_lin)
        log_f = -_softplus(diff)
        log_i = -_softplus(-diff)
        log_values = jnp.concatenate([_log_g(h), log_i + _log_g(h_lin)], axis=1)
        # a_star = F.pad(cumsum(log_f, dim=1), (0, 0, 0, 1)) -> append a zero row
        a_star = jnp.pad(jnp.cumsum(log_f, axis=1), ((0, 0), (0, 1), (0, 0)))
        v = log_values - a_star                                # (B, 2, H)
        lcse = jnp.concatenate([v[:, :1], jnp.logaddexp(v[:, :1], v[:, 1:2])], axis=1)
        log_h = a_star + lcse
        h = jnp.exp(log_h)[:, 1:]                              # (B, 1, H)
        outs.append(h)
    return jnp.concatenate(outs, axis=1)                       # (B, T, H)


if __name__ == "__main__":
    B, T, D_IN, HID = 2, 8, 4, 32

    key = jax.random.PRNGKey(0)
    kx, kwf, kwi, kwh, kbf, kbi, kbh = jax.random.split(key, 7)

    x = jax.random.normal(kx, (B, T, D_IN), dtype=jnp.float32)

    # deterministic init mimicking nn.Linear default: U(-1/sqrt(D_in), 1/sqrt(D_in));
    # torch stores weight as (H, D); we store W^T = (D, H) so x @ W == linear(x).
    bound = 1.0 / float(np.sqrt(D_IN))
    wf = jax.random.uniform(kwf, (D_IN, HID), jnp.float32, -bound, bound)
    wi = jax.random.uniform(kwi, (D_IN, HID), jnp.float32, -bound, bound)
    wh = jax.random.uniform(kwh, (D_IN, HID), jnp.float32, -bound, bound)
    bf = jax.random.uniform(kbf, (HID,), jnp.float32, -bound, bound)
    bi = jax.random.uniform(kbi, (HID,), jnp.float32, -bound, bound)
    bh = jax.random.uniform(kbh, (HID,), jnp.float32, -bound, bound)

    ref = minlstm_ref(x, wf, wi, wh, bf, bi, bh)

    # 1) f32-MXU path, chunk_t=3 -> 3 chunks over T=8: exercises the cross-chunk state
    #    carry and the trailing time-padding path.
    out_f32 = jax.block_until_ready(
        minlstm_forward(x, wf, wi, wh, bf, bi, bh, chunk_t=3, mxu_dtype=jnp.float32))
    assert out_f32.shape == (B, T, HID)
    assert np.allclose(np.asarray(out_f32), np.asarray(ref), rtol=1e-2, atol=1e-2), \
        "Pallas kernel (f32 MXU) mismatch vs literal PyTorch-math JAX reference"

    # 2) default fast path (bf16 MXU operands, single chunk): looser tolerance for the
    #    bf16 operand rounding accumulated through the recurrence.
    out_bf16 = jax.block_until_ready(minlstm_forward(x, wf, wi, wh, bf, bi, bh))
    assert out_bf16.shape == (B, T, HID)
    assert np.allclose(np.asarray(out_bf16), np.asarray(ref), rtol=5e-2, atol=5e-2), \
        "Pallas kernel (bf16 MXU) mismatch vs literal PyTorch-math JAX reference"

    print("KERNEL_OK")
</pallas_src>

<mosaic_0001>
module attributes {stable_mosaic.version = 11 : i64} {
  func.func @_minlstm_chunk_kernel(%arg0: i32, %arg1: i32, %arg2: memref<3x8x4xf32, #tpu.memory_space<vmem>>, %arg3: memref<4x384xf32, #tpu.memory_space<vmem>>, %arg4: memref<1x384xf32, #tpu.memory_space<vmem>>, %arg5: memref<3x8x128xf32, #tpu.memory_space<vmem>>, %arg6: memref<8x128xf32, #tpu.memory_space<vmem>>, %arg7: memref<3x8x128xf32, #tpu.memory_space<vmem>>, %arg8: memref<3x8x128xf32, #tpu.memory_space<vmem>>) attributes {dimension_semantics = [#tpu.dimension_semantics<parallel>, #tpu.dimension_semantics<arbitrary>], iteration_bounds = array<i64: 1, 3>, scalar_prefetch = 0 : i64, scratch_operands = 3 : i64, tpu.core_type = #tpu.core_type<tc>, window_params = [{transform_indices = @transform_0, window_bounds = array<i64: 3, 8, 4>}, {pipeline_mode = #tpu.pipeline_mode<synchronous>, transform_indices = @transform_1, window_bounds = array<i64: 4, 384>}, {pipeline_mode = #tpu.pipeline_mode<synchronous>, transform_indices = @transform_2, window_bounds = array<i64: 1, 384>}, {transform_indices = @transform_3, window_bounds = array<i64: 3, 8, 128>}]} {
    %c0_i32 = arith.constant 0 : i32
    %0 = arith.cmpi eq, %arg1, %c0_i32 : i32
    %1 = arith.extui %0 : i1 to i32
    %c0_i32_0 = arith.constant 0 : i32
    %2 = arith.cmpi ne, %1, %c0_i32_0 : i32
    scf.if %2 {
      %cst_49 = arith.constant 0.000000e+00 : f32
      %93 = vector.broadcast %cst_49 : f32 to vector<8x128xf32>
      %c0_50 = arith.constant 0 : index
      %c0_51 = arith.constant 0 : index
      %94 = vector.load %arg6[%c0_50, %c0_51] : memref<8x128xf32, #tpu.memory_space<vmem>>, vector<8x128xf32>
      tpu.vector_store %arg6[%c0_50, %c0_51], %93 {strides = array<i32>} : memref<8x128xf32, #tpu.memory_space<vmem>>, vector<8x128xf32>,
    } else {
    }
    %c0 = arith.constant 0 : index
    %c0_1 = arith.constant 0 : index
    %c0_2 = arith.constant 0 : index
    %3 = vector.load %arg2[%c0, %c0_1, %c0_2] : memref<3x8x4xf32, #tpu.memory_space<vmem>>, vector<3x8x4xf32>
    %4 = vector.shape_cast %3 : vector<3x8x4xf32> to vector<24x4xf32>
    %c0_3 = arith.constant 0 : index
    %c0_4 = arith.constant 0 : index
    %5 = vector.load %arg3[%c0_3, %c0_4] : memref<4x384xf32, #tpu.memory_space<vmem>>, vector<4x384xf32>
    %cst = arith.constant dense<0.000000e+00> : vector<24x384xf32>
    %6 = tpu.matmul %4, %5, %cst {dimension_numbers = #tpu.dot_dimension_numbers<[1], [0], [0], [1], [0, 0, 1, 1], [], []>} : vector<24x4xf32>, vector<4x384xf32>, vector<24x384xf32> -> vector<24x384xf32>
    %c0_5 = arith.constant 0 : index
    %c0_6 = arith.constant 0 : index
    %7 = vector.load %arg4[%c0_5, %c0_6] : memref<1x384xf32, #tpu.memory_space<vmem>>, vector<1x384xf32>
    %8 = vector.broadcast %7 : vector<1x384xf32> to vector<24x384xf32>
    %9 = arith.addf %6, %8 : vector<24x384xf32>
    %10 = vector.extract_strided_slice %9 {offsets = [0, 0], sizes = [24, 128], strides = [1, 1]} : vector<24x384xf32> to vector<24x128xf32>
    %11 = vector.extract_strided_slice %9 {offsets = [0, 128], sizes = [24, 128], strides = [1, 1]} : vector<24x384xf32> to vector<24x128xf32>
    %12 = vector.extract_strided_slice %9 {offsets = [0, 256], sizes = [24, 128], strides = [1, 1]} : vector<24x384xf32> to vector<24x128xf32>
    %cst_7 = arith.constant 0.000000e+00 : f32
    %13 = vector.broadcast %cst_7 : f32 to vector<24x128xf32>
    %14 = arith.subf %13, %10 : vector<24x128xf32>
    %cst_8 = arith.constant 8.000000e+01 : f32
    %15 = vector.broadcast %cst_8 : f32 to vector<24x128xf32>
    %16 = arith.minimumf %14, %15 : vector<24x128xf32>
    %17 = math.exp %16 : vector<24x128xf32>
    %cst_9 = arith.constant 0.000000e+00 : f32
    %18 = vector.broadcast %cst_9 : f32 to vector<24x128xf32>
    %19 = arith.subf %18, %11 : vector<24x128xf32>
    %cst_10 = arith.constant 8.000000e+01 : f32
    %20 = vector.broadcast %cst_10 : f32 to vector<24x128xf32>
    %21 = arith.minimumf %19, %20 : vector<24x128xf32>
    %22 = math.exp %21 : vector<24x128xf32>
    %cst_11 = arith.constant 2.000000e+00 : f32
    %23 = vector.broadcast %cst_11 : f32 to vector<24x128xf32>
    %24 = arith.addf %23, %17 : vector<24x128xf32>
    %25 = arith.addf %24, %22 : vector<24x128xf32>
    %cst_12 = arith.constant 1.000000e+00 : f32
    %26 = vector.broadcast %cst_12 : f32 to vector<24x128xf32>
    %27 = arith.addf %26, %22 : vector<24x128xf32>
    %28 = tpu.reciprocal %27 {approx = true} : vector<24x128xf32> -> vector<24x128xf32>
    %29 = arith.mulf %25, %28 : vector<24x128xf32>
    %cst_13 = arith.constant 1.000000e+00 : f32
    %30 = vector.broadcast %cst_13 : f32 to vector<24x128xf32>
    %31 = arith.addf %30, %17 : vector<24x128xf32>
    %32 = tpu.reciprocal %25 {approx = true} : vector<24x128xf32> -> vector<24x128xf32>
    %33 = arith.mulf %31, %32 : vector<24x128xf32>
    %cst_14 = arith.constant 0.000000e+00 : f32
    %34 = vector.broadcast %cst_14 : f32 to vector<24x128xf32>
    %35 = arith.subf %34, %12 : vector<24x128xf32>
    %cst_15 = arith.constant 8.000000e+01 : f32
    %36 = vector.broadcast %cst_15 : f32 to vector<24x128xf32>
    %37 = arith.minimumf %35, %36 : vector<24x128xf32>
    %38 = math.exp %37 : vector<24x128xf32>
    %cst_16 = arith.constant 0.000000e+00 : f32
    %39 = vector.broadcast %cst_16 : f32 to vector<24x128xf32>
    %40 = arith.cmpf oge, %12, %39 : vector<24x128xf32>
    %cst_17 = arith.constant 5.000000e-01 : f32
    %41 = vector.broadcast %cst_17 : f32 to vector<24x128xf32>
    %42 = arith.addf %12, %41 : vector<24x128xf32>
    %cst_18 = arith.constant 1.000000e+00 : f32
    %43 = vector.broadcast %cst_18 : f32 to vector<24x128xf32>
    %44 = arith.addf %43, %38 : vector<24x128xf32>
    %45 = tpu.reciprocal %44 {approx = true} : vector<24x128xf32> -> vector<24x128xf32>
    %46 = arith.select %40, %42, %45 : vector<24x128xi1>, vector<24x128xf32>
    %47 = arith.mulf %33, %46 : vector<24x128xf32>
    %cst_19 = arith.constant 5.000000e-01 : f32
    %48 = vector.broadcast %cst_19 : f32 to vector<24x128xf32>
    %49 = arith.mulf %48, %29 : vector<24x128xf32>
    %50 = arith.addf %47, %49 : vector<24x128xf32>
    %51 = vector.shape_cast %29 : vector<24x128xf32> to vector<3x8x128xf32>
    %c0_20 = arith.constant 0 : index
    %c0_21 = arith.constant 0 : index
    %c0_22 = arith.constant 0 : index
    %52 = vector.load %arg7[%c0_20, %c0_21, %c0_22] : memref<3x8x128xf32, #tpu.memory_space<vmem>>, vector<3x8x128xf32>
    tpu.vector_store %arg7[%c0_20, %c0_21, %c0_22], %51 {strides = array<i32>} : memref<3x8x128xf32, #tpu.memory_space<vmem>>, vector<3x8x128xf32>,
    %53 = vector.shape_cast %50 : vector<24x128xf32> to vector<3x8x128xf32>
    %c0_23 = arith.constant 0 : index
    %c0_24 = arith.constant 0 : index
    %c0_25 = arith.constant 0 : index
    %54 = vector.load %arg8[%c0_23, %c0_24, %c0_25] : memref<3x8x128xf32, #tpu.memory_space<vmem>>, vector<3x8x128xf32>
    tpu.vector_store %arg8[%c0_23, %c0_24, %c0_25], %53 {strides = array<i32>} : memref<3x8x128xf32, #tpu.memory_space<vmem>>, vector<3x8x128xf32>,
    %c0_26 = arith.constant 0 : index
    %c0_27 = arith.constant 0 : index
    %55 = vector.load %arg6[%c0_26, %c0_27] : memref<8x128xf32, #tpu.memory_space<vmem>>, vector<8x128xf32>
    %c0_i32_28 = arith.constant 0 : i32
    %56 = arith.index_cast %c0_i32_28 : i32 to index
    %c0_29 = arith.constant 0 : index
    %c0_30 = arith.constant 0 : index
    %57 = vector.load %arg7[%56, %c0_29, %c0_30] : memref<3x8x128xf32, #tpu.memory_space<vmem>>, vector<1x8x128xf32>
    %58 = vector.shape_cast %57 : vector<1x8x128xf32> to vector<8x128xf32>
    %59 = arith.mulf %55, %58 : vector<8x128xf32>
    %60 = arith.index_cast %c0_i32_28 : i32 to index
    %c0_31 = arith.constant 0 : index
    %c0_32 = arith.constant 0 : index
    %61 = vector.load %arg8[%60, %c0_31, %c0_32] : memref<3x8x128xf32, #tpu.memory_space<vmem>>, vector<1x8x128xf32>
    %62 = vector.shape_cast %61 : vector<1x8x128xf32> to vector<8x128xf32>
    %63 = arith.addf %59, %62 : vector<8x128xf32>
    %64 = arith.index_cast %c0_i32_28 : i32 to index
    %c0_33 = arith.constant 0 : index
    %c0_34 = arith.constant 0 : index
    %65 = vector.load %arg5[%64, %c0_33, %c0_34] : memref<3x8x128xf32, #tpu.memory_space<vmem>>, vector<1x8x128xf32>
    %66 = vector.shape_cast %65 : vector<1x8x128xf32> to vector<8x128xf32>
    %67 = vector.shape_cast %63 : vector<8x128xf32> to vector<1x8x128xf32>
    tpu.vector_store %arg5[%64, %c0_33, %c0_34], %67 {strides = array<i32>} : memref<3x8x128xf32, #tpu.memory_space<vmem>>, vector<1x8x128xf32>,
    %c1_i32 = arith.constant 1 : i32
    %68 = arith.index_cast %c1_i32 : i32 to index
    %c0_35 = arith.constant 0 : index
    %c0_36 = arith.constant 0 : index
    %69 = vector.load %arg7[%68, %c0_35, %c0_36] : memref<3x8x128xf32, #tpu.memory_space<vmem>>, vector<1x8x128xf32>
    %70 = vector.shape_cast %69 : vector<1x8x128xf32> to vector<8x128xf32>
    %71 = arith.mulf %63, %70 : vector<8x128xf32>
    %72 = arith.index_cast %c1_i32 : i32 to index
    %c0_37 = arith.constant 0 : index
    %c0_38 = arith.constant 0 : index
    %73 = vector.load %arg8[%72, %c0_37, %c0_38] : memref<3x8x128xf32, #tpu.memory_space<vmem>>, vector<1x8x128xf32>
    %74 = vector.shape_cast %73 : vector<1x8x128xf32> to vector<8x128xf32>
    %75 = arith.addf %71, %74 : vector<8x128xf32>
    %76 = arith.index_cast %c1_i32 : i32 to index
    %c0_39 = arith.constant 0 : index
    %c0_40 = arith.constant 0 : index
    %77 = vector.load %arg5[%76, %c0_39, %c0_40] : memref<3x8x128xf32, #tpu.memory_space<vmem>>, vector<1x8x128xf32>
    %78 = vector.shape_cast %77 : vector<1x8x128xf32> to vector<8x128xf32>
    %79 = vector.shape_cast %75 : vector<8x128xf32> to vector<1x8x128xf32>
    tpu.vector_store %arg5[%76, %c0_39, %c0_40], %79 {strides = array<i32>} : memref<3x8x128xf32, #tpu.memory_space<vmem>>, vector<1x8x128xf32>,
    %c2_i32 = arith.constant 2 : i32
    %80 = arith.index_cast %c2_i32 : i32 to index
    %c0_41 = arith.constant 0 : index
    %c0_42 = arith.constant 0 : index
    %81 = vector.load %arg7[%80, %c0_41, %c0_42] : memref<3x8x128xf32, #tpu.memory_space<vmem>>, vector<1x8x128xf32>
    %82 = vector.shape_cast %81 : vector<1x8x128xf32> to vector<8x128xf32>
    %83 = arith.mulf %75, %82 : vector<8x128xf32>
    %84 = arith.index_cast %c2_i32 : i32 to index
    %c0_43 = arith.constant 0 : index
    %c0_44 = arith.constant 0 : index
    %85 = vector.load %arg8[%84, %c0_43, %c0_44] : memref<3x8x128xf32, #tpu.memory_space<vmem>>, vector<1x8x128xf32>
    %86 = vector.shape_cast %85 : vector<1x8x128xf32> to vector<8x128xf32>
    %87 = arith.addf %83, %86 : vector<8x128xf32>
    %88 = arith.index_cast %c2_i32 : i32 to index
    %c0_45 = arith.constant 0 : index
    %c0_46 = arith.constant 0 : index
    %89 = vector.load %arg5[%88, %c0_45, %c0_46] : memref<3x8x128xf32, #tpu.memory_space<vmem>>, vector<1x8x128xf32>
    %90 = vector.shape_cast %89 : vector<1x8x128xf32> to vector<8x128xf32>
    %91 = vector.shape_cast %87 : vector<8x128xf32> to vector<1x8x128xf32>
    tpu.vector_store %arg5[%88, %c0_45, %c0_46], %91 {strides = array<i32>} : memref<3x8x128xf32, #tpu.memory_space<vmem>>, vector<1x8x128xf32>,
    %c3_i32 = arith.constant 3 : i32
    %c0_47 = arith.constant 0 : index
    %c0_48 = arith.constant 0 : index
    %92 = vector.load %arg6[%c0_47, %c0_48] : memref<8x128xf32, #tpu.memory_space<vmem>>, vector<8x128xf32>
    tpu.vector_store %arg6[%c0_47, %c0_48], %87 {strides = array<i32>} : memref<8x128xf32, #tpu.memory_space<vmem>>, vector<8x128xf32>,
    return
  }
  func.func @transform_0(%arg0: i32, %arg1: i32) -> (i32, i32, i32) {
    %c0_i32 = arith.constant 0 : i32
    %c0_i32_0 = arith.constant 0 : i32
    return %arg1, %arg0, %c0_i32 : i32, i32, i32
  }
  func.func @transform_1(%arg0: i32, %arg1: i32) -> (i32, i32) {
    %c0_i32 = arith.constant 0 : i32
    %c0_i32_0 = arith.constant 0 : i32
    %c0_i32_1 = arith.constant 0 : i32
    return %c0_i32, %c0_i32_0 : i32, i32
  }
  func.func @transform_2(%arg0: i32, %arg1: i32) -> (i32, i32) {
    %c0_i32 = arith.constant 0 : i32
    %c0_i32_0 = arith.constant 0 : i32
    %c0_i32_1 = arith.constant 0 : i32
    return %c0_i32, %c0_i32_0 : i32, i32
  }
  func.func @transform_3(%arg0: i32, %arg1: i32) -> (i32, i32, i32) {
    %c0_i32 = arith.constant 0 : i32
    %c0_i32_0 = arith.constant 0 : i32
    return %arg1, %arg0, %c0_i32 : i32, i32, i32
  }
}

</mosaic_0001>

<llo_original>
// kernel: tpu_custom_call.1
$region0: #{tpu_custom_call.1}
  #allocation0 [shape = 'u32[]', space=smem, size = 0x4, offset = 0x4, fixed_abs, tag = 'smem constant byte address 0x4 - core index']
  #allocation1 [shape = 'u32[144,128]{1,0:T(1,128)}', space=vmem, size = 0x12000, scoped, tag = 'internal scratch']
  #allocation2 [shape = 'f32[8,128]{1,0:T(8,128)}', space=vmem, size = 0x1000, scoped, tag = 'scratch operand']
  #allocation3 [shape = 'f32[3,8,128]{2,1,0:T(8,128)}', space=vmem, size = 0x3000, scoped, tag = 'scratch operand']
  #allocation4 [shape = 'f32[3,8,128]{2,1,0:T(8,128)}', space=vmem, size = 0x3000, scoped, tag = 'scratch operand']
  %s0 = inlined_call_operand.vmem [shape: f32[9,8,4], index: 0, kind: input, shape index: {}]
  %s1 = inlined_call_operand.vmem [shape: f32[4,384], index: 1, kind: input, shape index: {}]
  %s2 = inlined_call_operand.vmem [shape: f32[1,384], index: 2, kind: input, shape index: {}]
  %s3 = inlined_call_operand.hbm [shape: f32[9,8,128], index: 3, kind: output, shape index: {}]
  %s4 = sld [smem:[#allocation0]]
  $region49: #{tpu_custom_call.1} parent=0
    _
  %s6 = ssub.s32 1, %s4
  %s7 = scalar_select 0, %s6, %s4
  $region1: #{tpu_custom_call.1} parent=0
    #allocation5 [shape = 'u8[24576]{0}', space=vmem, size = 0x6000, scoped, tag = 'output window, operand 0']
    #allocation6 [shape = 's32[2]{0}', space=sflag, size = 0x8, scoped, tag = 'scoped memory for tpu_custom_call.1']
    %8 = vsyncpa [#allocation6], 0
    %s9 = scalar_lea.sflag [#allocation6], 1
    %10 = vsyncpa %s9, 0
    loop: start=0, step=1, limit=5
    $region2: #{tpu_custom_call.1} parent=1 // loop_pre_header
      _
    $region3: #{tpu_custom_call.1} parent=1 // loop_header
      %s12 = sphi 0, %s16
      %p13 = scmp.ge.s32.totalorder %s12, 5
      %s19 = sphi 0, %s31
      %s20 = sphi 0, %s27
      %s21 = sphi 0, %s19
      %s22 = sphi 0, %s20
      %s23 = sphi 0, %s21
      %s24 = sphi 0, %s22
      %s36 = sphi 0, %s38
      %s39 = sphi 0, %s36
      %s40 = sphi 0, %s39
      %s56 = sphi 0, %s40
      %s60 = sphi 0, %s60
      %s62 = sphi 0, %s60
      %s63 = sphi 0, %s62
      %s77 = sphi 0, %s63
      %s81 = sphi 0, %s81
      %s83 = sphi 0, %s81
      %s84 = sphi 0, %s83
      %s98 = sphi 0, %s84
      %s106 = sphi 0, %s108
      %s109 = sphi 0, %s106
      %s110 = sphi 0, %s109
      %s126 = sphi 0, %s110
    $region4: #{tpu_custom_call.1} parent=1 // loop_header_branch
      %15 = sbr.rel (%p13) target = $region8
    $region5: #{tpu_custom_call.1} parent=1 // loop_body
      %s17 = ssub.s32 %s12, 1
      %s18 = ssub.s32 %s12, 2
      %s25 = sadd.s32 1, %s20
      %p26 = scmp.ge.s32.totalorder %s25, 3
      %s27 = scalar_select %p26, 0, %s25
      %s28 = sadd.s32 1, %s19
      %s29 = scalar_select %p26, %s28, %s19
      %p30 = scmp.ge.s32.totalorder %s29, 1
      %s31 = scalar_select %p30, 0, %s29
      %s32 = ssub.s32 %s20, %s27
      %s33 = ssub.s32 %s19, %s31
      %s34 = sor.u32 %s32, %s33
      %p35 = scmp.eq.s32.totalorder %s34, 0
      %s37 = sadd.s32 %s36, 1
      %s38 = scalar_select %p35, %s36, %s37
      %p41 = pneg %p35
      %p42 = scmp.eq.s32.totalorder %s12, 2
      %p43 = por %p41, %p42
      %p44 = scmp.ne.s32.totalorder %s36, %s39
      %p45 = scmp.eq.s32.totalorder %s12, 0
      %p46 = por %p44, %p45
      %p47 = scmp.ne.s32.totalorder %s36, %s39
      %p48 = scmp.eq.s32.totalorder %s17, 2
      %p49 = por %p47, %p48
      %p50 = scmp.ne.s32.totalorder %s39, %s40
      %p51 = scmp.eq.s32.totalorder %s17, 0
      %p52 = por %p50, %p51
      %p53 = scmp.ne.s32.totalorder %s39, %s40
      %p54 = scmp.eq.s32.totalorder %s18, 2
      %p55 = por %p53, %p54
      %p57 = scmp.ne.s32.totalorder %s40, %s56
      %p58 = scmp.eq.s32.totalorder %s18, 0
      %p59 = por %p57, %p58
      %s61 = sadd.s32 %s60, 1
      %p64 = scmp.eq.s32.totalorder %s12, 2
      %p65 = scmp.ne.s32.totalorder %s60, %s62
      %p66 = scmp.eq.s32.totalorder %s12, 0
      %p67 = por %p65, %p66
      %p68 = scmp.ne.s32.totalorder %s60, %s62
      %p69 = scmp.eq.s32.totalorder %s17, 2
      %p70 = por %p68, %p69
      %p71 = scmp.ne.s32.totalorder %s62, %s63
      %p72 = scmp.eq.s32.totalorder %s17, 0
      %p73 = por %p71, %p72
      %p74 = scmp.ne.s32.totalorder %s62, %s63
      %p75 = scmp.eq.s32.totalorder %s18, 2
      %p76 = por %p74, %p75
      %p78 = scmp.ne.s32.totalorder %s63, %s77
      %p79 = scmp.eq.s32.totalorder %s18, 0
      %p80 = por %p78, %p79
      %s82 = sadd.s32 %s81, 1
      %p85 = scmp.eq.s32.totalorder %s12, 2
      %p86 = scmp.ne.s32.totalorder %s81, %s83
      %p87 = scmp.eq.s32.totalorder %s12, 0
      %p88 = por %p86, %p87
      %p89 = scmp.ne.s32.totalorder %s81, %s83
      %p90 = scmp.eq.s32.totalorder %s17, 2
      %p91 = por %p89, %p90
      %p92 = scmp.ne.s32.totalorder %s83, %s84
      %p93 = scmp.eq.s32.totalorder %s17, 0
      %p94 = por %p92, %p93
      %p95 = scmp.ne.s32.totalorder %s83, %s84
      %p96 = scmp.eq.s32.totalorder %s18, 2
      %p97 = por %p95, %p96
      %p99 = scmp.ne.s32.totalorder %s84, %s98
      %p100 = scmp.eq.s32.totalorder %s18, 0
      %p101 = por %p99, %p100
      %s102 = ssub.s32 %s20, %s27
      %s103 = ssub.s32 %s19, %s31
      %s104 = sor.u32 %s102, %s103
      %p105 = scmp.eq.s32.totalorder %s104, 0
      %s107 = sadd.s32 %s106, 1
      %s108 = scalar_select %p105, %s106, %s107
      %p111 = pneg %p105
      %p112 = scmp.eq.s32.totalorder %s12, 2
      %p113 = por %p111, %p112
      %p114 = scmp.ne.s32.totalorder %s106, %s109
      %p115 = scmp.eq.s32.totalorder %s12, 0
      %p116 = por %p114, %p115
      %p117 = scmp.ne.s32.totalorder %s106, %s109
      %p118 = scmp.eq.s32.totalorder %s17, 2
      %p119 = por %p117, %p118
      %p120 = scmp.ne.s32.totalorder %s109, %s110
      %p121 = scmp.eq.s32.totalorder %s17, 0
      %p122 = por %p120, %p121
      %p123 = scmp.ne.s32.totalorder %s109, %s110
      %p124 = scmp.eq.s32.totalorder %s18, 2
      %p125 = por %p123, %p124
      %p127 = scmp.ne.s32.totalorder %s110, %s126
      %p128 = scmp.eq.s32.totalorder %s18, 0
      %p129 = por %p127, %p128
      %p130 = scmp.le.s32.totalorder 1, %s12
      %p131 = scmp.lt.s32.totalorder %s12, 4
      %p132 = pnand %p130, %p131
      %p133 = pneg %p132
      // Predicated region
      $region9: #{tpu_custom_call.1} parent=5 // pred_check
        _
      $region10: #{tpu_custom_call.1} parent=5 // pred_check_branch
        %135 = sbr.rel (%p132) target = $region12
      $region11: #{tpu_custom_call.1} parent=5 // pred_region
        %s136 = ssub.s32 %s12, 1
        // Predicated region
        $region13: #{tpu_custom_call.1} parent=11 // pred_check
          %p137 = pneg %p73
        $region14: #{tpu_custom_call.1} parent=11 // pred_check_branch
          %139 = sbr.rel (%p137) target = $region16
        $region15: #{tpu_custom_call.1} parent=11 // pred_region
          _
        $region16: #{tpu_custom_call.1} parent=11 // pred_fallthru
          _
        // Predicated region
        $region17: #{tpu_custom_call.1} parent=11 // pred_check
          %p140 = pneg %p94
        $region18: #{tpu_custom_call.1} parent=11 // pred_check_branch
          %142 = sbr.rel (%p140) target = $region20
        $region19: #{tpu_custom_call.1} parent=11 // pred_region
          _
        $region20: #{tpu_custom_call.1} parent=11 // pred_fallthru
          _
      $region12: #{tpu_custom_call.1} parent=5 // pred_fallthru
        _
      %p143 = scmp.lt.s32.totalorder %s12, 3
      // Predicated region
      $region21: #{tpu_custom_call.1} parent=5 // pred_check
        %p144 = pneg %p143
      $region22: #{tpu_custom_call.1} parent=5 // pred_check_branch
        %146 = sbr.rel (%p144) target = $region24
      $region23: #{tpu_custom_call.1} parent=5 // pred_region
        // Predicated region
        $region25: #{tpu_custom_call.1} parent=23 // pred_check
          %p147 = pneg %p46
        $region26: #{tpu_custom_call.1} parent=23 // pred_check_branch
          %149 = sbr.rel (%p147) target = $region28
        $region27: #{tpu_custom_call.1} parent=23 // pred_region
          %s150 = smul.u32 3, %s20
          %p151 = scmp.lt.s32.totalorder %s150, 8
          %s152 = scalar_select %p151, %s150, 8
          %p153 = scmp.lt.s32.totalorder %s19, 0
          %s154 = scalar_select %p153, %s19, 0
          %s155 = sadd.s32 %s154, %s152
          %s156 = smul.addr %s155, 8
          %s157 = scalar_lea.vmem %s0, %s156
          %s158 = smul.u32 3, %s20
        $region28: #{tpu_custom_call.1} parent=23 // pred_fallthru
          _
      $region24: #{tpu_custom_call.1} parent=5 // pred_fallthru
        _
      %p159 = scmp.le.s32.totalorder 1, %s12
      %p160 = scmp.lt.s32.totalorder %s12, 4
      %p161 = pnand %p159, %p160
      %p162 = pneg %p161
      // Predicated region
      $region29: #{tpu_custom_call.1} parent=5 // pred_check
        _
      $region30: #{tpu_custom_call.1} parent=5 // pred_check_branch
        %164 = sbr.rel (%p161) target = $region32
      $region31: #{tpu_custom_call.1} parent=5 // pred_region
        %s165 = ssub.s32 %s12, 1
        %s166 = smul.u32 3, %s22
        %p167 = scmp.lt.s32.totalorder %s166, 8
        %s168 = scalar_select %p167, %s166, 8
        %p169 = scmp.lt.s32.totalorder %s21, 0
        %s170 = scalar_select %p169, %s21, 0
        %s171 = sadd.s32 %s170, %s168
        %s172 = smul.addr %s171, 8
        %s173 = scalar_lea.vmem %s0, %s172
        %p174 = pneg %p52
        %p175 = pneg %p49
        %p176 = pneg %p73
        %p177 = pneg %p70
        %p178 = pneg %p94
        %p179 = pneg %p91
        %p180 = pneg %p122
        %p181 = pneg %p119
        %s182 = sand.u32 %s109, 1
        %s183 = scalar_lea.sflag [#allocation6], %s182
        %s184 = sand.u32 %s109, 1
        %s185 = smul.addr %s184, 24
        %s186 = scalar_lea.vmem [#allocation5], %s185
        %s187 = smul.u32 3, %s22
        %p188 = scmp.lt.s32.totalorder %s187, 8
        %s189 = scalar_select %p188, %s187, 8
        %p190 = scmp.lt.s32.totalorder %s21, 0
        %s191 = scalar_select %p190, %s21, 0
        %s192 = sadd.s32 %s191, %s189
        %s193 = smul.addr %s192, 8
        %s194 = scalar_lea.vmem %s0, %s193
        %s195 = smul.u32 3, %s22
        %s196 = smul.u32 3, %s22
        %p197 = scmp.eq.s32.totalorder %s22, 0
        // Predicated region
        $region33: #{tpu_custom_call.1} parent=31 // pred_check
          %p198 = pneg %p197
        $region34: #{tpu_custom_call.1} parent=31 // pred_check_branch
          %200 = sbr.rel (%p198) target = $region36
        $region35: #{tpu_custom_call.1} parent=31 // pred_region
          %201 = vst [vmem:[#allocation2] sm:$0xff] 0.0
        $region36: #{tpu_custom_call.1} parent=31 // pred_fallthru
          _
        %v202 = vld [vmem:[%s194] sm:$0xff]
        %v203 = vld [vmem:[%s194 + $0x8] sm:$0xff]
        %v204 = vld [vmem:[%s194 + $0x10] sm:$0xff]
        %v205 = vld [vmem:[%s1] sm:$0xff]
        %v206 = vld [vmem:[%s1 + $0x8] sm:$0xf]
        %v207 = vld [vmem:[%s2] sm:$0x7]
        %v209 = vlaneseq
        %v210 = vshrl.u32 %v209, 7
        %v211 = vsub.s32 0, %v210
        %v212 = vrot.slane %v207, %v211
        %v213 = vlaneseq
        %v214 = vshrl.u32 %v213, 7
        %v215 = vsub.s32 1, %v214
        %v216 = vrot.slane %v207, %v215
        %v217 = vlaneseq
        %v218 = vshrl.u32 %v217, 7
        %v219 = vsub.s32 2, %v218
        %v220 = vrot.slane %v207, %v219
        %v226 = vcombine.high %v205, %v205
        %vm227 = vcmask 31744
        %v229 = vsel %vm227, %v202, 0
        %v232 = vsel %vm227, %v203, 0
        %v235 = vsel %vm227, %v204, 0
        %vm237 = vcmask 1043456
        %v238 = vsel %vm237, %v205, 0
        %v240 = vsel %vm237, %v226, 0
        %v242 = vsel %vm237, %v206, 0
        %244 = vmatprep.subr.mxu0 0.0
        %245 = vmatpush1.msra.mxu0 0.0
        %246 = vmatprep.subr.mxu0 0.0
        %247 = vmatpush1.msra.mxu0 0.0
        %248 = vmatprep.subr.mxu0 0.0
        %249 = vmatpush1.msra.mxu0 0.0
        %250 = vmatprep.subr.mxu0 0.0
        %251 = vmatpush1.msra.mxu0 0.0
        %252 = vmatprep.subr.mxu0 0.0
        %253 = vmatpush1.msra.mxu0 0.0
        %254 = vmatprep.subr.mxu0 0.0
        %255 = vmatpush1.msra.mxu0 0.0
        %256 = vmatprep.subr.mxu0 0.0
        %257 = vmatpush1.msra.mxu0 0.0
        %258 = vmatprep.subr.mxu0 0.0
        %259 = vmatpush1.msra.mxu0 0.0
        %260 = vmatprep.subr.mxu0 0.0
        %261 = vmatpush1.msra.mxu0 0.0
        %262 = vmatprep.subr.mxu0 0.0
        %263 = vmatpush1.msra.mxu0 0.0
        %264 = vmatprep.subr.mxu0 0.0
        %265 = vmatpush1.msra.mxu0 0.0
        %266 = vmatprep.subr.mxu0 0.0
        %267 = vmatpush1.msra.mxu0 0.0
        %268 = vmatprep.subr.mxu0 0.0
        %269 = vmatpush1.msra.mxu0 0.0
        %270 = vmatprep.subr.mxu0 0.0
        %271 = vmatpush1.msra.mxu0 0.0
        %272 = vmatprep.subr.mxu0 0.0
        %273 = vmatpush1.msra.mxu0 0.0
        %274 = vmatprep.subr.mxu0 %v240
        %275 = vmatpush1.msra.mxu0 %v238
        %276 = vmatprep.subr.mxu0 0.0
        %277 = vmatpush2.msra.mxu0 0.0
        %278 = vmatprep.subr.mxu0 0.0
        %279 = vmatpush2.msra.mxu0 0.0
        %280 = vmatprep.subr.mxu0 0.0
        %281 = vmatpush2.msra.mxu0 0.0
        %282 = vmatprep.subr.mxu0 0.0
        %283 = vmatpush2.msra.mxu0 0.0
        %284 = vmatprep.subr.mxu0 0.0
        %285 = vmatpush2.msra.mxu0 0.0
        %286 = vmatprep.subr.mxu0 0.0
        %287 = vmatpush2.msra.mxu0 0.0
        %288 = vmatprep.subr.mxu0 0.0
        %289 = vmatpush2.msra.mxu0 0.0
        %290 = vmatprep.subr.mxu0 0.0
        %291 = vmatpush2.msra.mxu0 0.0
        %292 = vmatprep.subr.mxu0 0.0
        %293 = vmatpush2.msra.mxu0 0.0
        %294 = vmatprep.subr.mxu0 0.0
        %295 = vmatpush2.msra.mxu0 0.0
        %296 = vmatprep.subr.mxu0 0.0
        %297 = vmatpush2.msra.mxu0 0.0
        %298 = vmatprep.subr.mxu0 0.0
        %299 = vmatpush2.msra.mxu0 0.0
        %300 = vmatprep.subr.mxu0 0.0
        %301 = vmatpush2.msra.mxu0 0.0
        %302 = vmatprep.subr.mxu0 0.0
        %303 = vmatpush2.msra.mxu0 0.0
        %304 = vmatprep.subr.mxu0 0.0
        %305 = vmatpush2.msra.mxu0 0.0
        %306 = vmatprep.subr.mxu0 0.0
        %307 = vmatpush2.msra.mxu0 0.0
        %308 = vmatprep.mubr.f32.mxu0 0.0
        %309 = vmatmul.mubr.f32.gmra.mxu0 %v229
        %v310 = vpop.f32.mrf.mxu0
        %v311 = vadd.f32 %v212, %v310
        %v312 = vpop.f32.mrf.mxu0
        %v313 = vadd.f32 %v216, %v312
        %314 = vmatprep.mubr.f32.mxu0 0.0
        %315 = vmatmul.mubr.f32.gmra.mxu0 %v232
        %v316 = vpop.f32.mrf.mxu0
        %v317 = vadd.f32 %v212, %v316
        %v318 = vpop.f32.mrf.mxu0
        %v319 = vadd.f32 %v216, %v318
        %320 = vmatprep.mubr.f32.mxu0 0.0
        %321 = vmatmul.mubr.f32.gmra.mxu0 %v235
        %v322 = vpop.f32.mrf.mxu0
        %v323 = vadd.f32 %v212, %v322
        %v324 = vpop.f32.mrf.mxu0
        %v325 = vadd.f32 %v216, %v324
        %326 = vdwg.mxu0
        %327 = vmatprep.subr.mxu0 0.0
        %328 = vmatpush1.msra.mxu0 0.0
        %329 = vmatprep.subr.mxu0 0.0
        %330 = vmatpush1.msra.mxu0 0.0
        %331 = vmatprep.subr.mxu0 0.0
        %332 = vmatpush1.msra.mxu0 0.0
        %333 = vmatprep.subr.mxu0 0.0
        %334 = vmatpush1.msra.mxu0 0.0
        %335 = vmatprep.subr.mxu0 0.0
        %336 = vmatpush1.msra.mxu0 0.0
        %337 = vmatprep.subr.mxu0 0.0
        %338 = vmatpush1.msra.mxu0 0.0
        %339 = vmatprep.subr.mxu0 0.0
        %340 = vmatpush1.msra.mxu0 0.0
        %341 = vmatprep.subr.mxu0 0.0
        %342 = vmatpush1.msra.mxu0 0.0
        %343 = vmatprep.subr.mxu0 0.0
        %344 = vmatpush1.msra.mxu0 0.0
        %345 = vmatprep.subr.mxu0 0.0
        %346 = vmatpush1.msra.mxu0 0.0
        %347 = vmatprep.subr.mxu0 0.0
        %348 = vmatpush1.msra.mxu0 0.0
        %349 = vmatprep.subr.mxu0 0.0
        %350 = vmatpush1.msra.mxu0 0.0
        %351 = vmatprep.subr.mxu0 0.0
        %352 = vmatpush1.msra.mxu0 0.0
        %353 = vmatprep.subr.mxu0 0.0
        %354 = vmatpush1.msra.mxu0 0.0
        %355 = vmatprep.subr.mxu0 0.0
        %356 = vmatpush1.msra.mxu0 0.0
        %357 = vmatprep.subr.mxu0 0.0
        %358 = vmatpush1.msra.mxu0 %v242
        %359 = vmatprep.subr.mxu0 0.0
        %360 = vmatpush2.msra.mxu0 0.0
        %361 = vmatprep.subr.mxu0 0.0
        %362 = vmatpush2.msra.mxu0 0.0
        %363 = vmatprep.subr.mxu0 0.0
        %364 = vmatpush2.msra.mxu0 0.0
        %365 = vmatprep.subr.mxu0 0.0
        %366 = vmatpush2.msra.mxu0 0.0
        %367 = vmatprep.subr.mxu0 0.0
        %368 = vmatpush2.msra.mxu0 0.0
        %369 = vmatprep.subr.mxu0 0.0
        %370 = vmatpush2.msra.mxu0 0.0
        %371 = vmatprep.subr.mxu0 0.0
        %372 = vmatpush2.msra.mxu0 0.0
        %373 = vmatprep.subr.mxu0 0.0
        %374 = vmatpush2.msra.mxu0 0.0
        %375 = vmatprep.subr.mxu0 0.0
        %376 = vmatpush2.msra.mxu0 0.0
        %377 = vmatprep.subr.mxu0 0.0
        %378 = vmatpush2.msra.mxu0 0.0
        %379 = vmatprep.subr.mxu0 0.0
        %380 = vmatpush2.msra.mxu0 0.0
        %381 = vmatprep.subr.mxu0 0.0
        %382 = vmatpush2.msra.mxu0 0.0
        %383 = vmatprep.subr.mxu0 0.0
        %384 = vmatpush2.msra.mxu0 0.0
        %385 = vmatprep.subr.mxu0 0.0
        %386 = vmatpush2.msra.mxu0 0.0
        %387 = vmatprep.subr.mxu0 0.0
        %388 = vmatpush2.msra.mxu0 0.0
        %389 = vmatprep.subr.mxu0 0.0
        %390 = vmatpush2.msra.mxu0 0.0
        %391 = vmatprep.mubr.f32.mxu0 0.0
        %392 = vmatmul.mubr.f32.gmra.mxu0 %v229
        %v393 = vpop.f32.mrf.mxu0
        %v394 = vadd.f32 %v220, %v393
        %v395 = vpop.f32.mrf.mxu0
        %396 = vmatprep.mubr.f32.mxu0 0.0
        %397 = vmatmul.mubr.f32.gmra.mxu0 %v232
        %v398 = vpop.f32.mrf.mxu0
        %v399 = vadd.f32 %v220, %v398
        %v400 = vpop.f32.mrf.mxu0
        %401 = vmatprep.mubr.f32.mxu0 0.0
        %402 = vmatmul.mubr.f32.gmra.mxu0 %v235
        %v403 = vpop.f32.mrf.mxu0
        %v404 = vadd.f32 %v220, %v403
        %v405 = vpop.f32.mrf.mxu0
        %406 = vdwg.mxu0
        %v407 = vsub.f32 0.0, %v311
        %v408 = vsub.f32 0.0, %v317
        %v409 = vsub.f32 0.0, %v323
        %v410 = vmin.f32 %v407, 80.0
        %v411 = vmin.f32 %v408, 80.0
        %v412 = vmin.f32 %v409, 80.0
        %v413 = vmul.f32 %v410, 1.442695
        %v414 = vpow.pop %v413
        %v415 = vmul.f32 %v411, 1.442695
        %v416 = vpow.pop %v415
        %v417 = vmul.f32 %v412, 1.442695
        %v418 = vpow.pop %v417
        %v419 = vsub.f32 0.0, %v313
        %v420 = vsub.f32 0.0, %v319
        %v421 = vsub.f32 0.0, %v325
        %v422 = vmin.f32 %v419, 80.0
        %v423 = vmin.f32 %v420, 80.0
        %v424 = vmin.f32 %v421, 80.0
        %v425 = vmul.f32 %v422, 1.442695
        %v426 = vpow.pop %v425
        %v427 = vmul.f32 %v423, 1.442695
        %v428 = vpow.pop %v427
        %v429 = vmul.f32 %v424, 1.442695
        %v430 = vpow.pop %v429
        %v431 = vadd.f32 %v414, 2.0
        %v432 = vadd.f32 %v416, 2.0
        %v433 = vadd.f32 %v418, 2.0
        %v434 = vadd.f32 %v431, %v426
        %v435 = vadd.f32 %v432, %v428
        %v436 = vadd.f32 %v433, %v430
        %v437 = vadd.f32 %v426, 1.0
        %v438 = vadd.f32 %v428, 1.0
        %v439 = vadd.f32 %v430, 1.0
        %v440 = vrcp.pop %v437
        %v441 = vrcp.pop %v438
        %v442 = vrcp.pop %v439
        %v443 = vmul.f32 %v434, %v440
        %v444 = vmul.f32 %v435, %v441
        %v445 = vmul.f32 %v436, %v442
        %v446 = vadd.f32 %v414, 1.0
        %v447 = vadd.f32 %v416, 1.0
        %v448 = vadd.f32 %v418, 1.0
        %v449 = vrcp.pop %v434
        %v450 = vrcp.pop %v435
        %v451 = vrcp.pop %v436
        %v452 = vmul.f32 %v446, %v449
        %v453 = vmul.f32 %v447, %v450
        %v454 = vmul.f32 %v448, %v451
        %v455 = vsub.f32 0.0, %v394
        %v456 = vsub.f32 0.0, %v399
        %v457 = vsub.f32 0.0, %v404
        %v458 = vmin.f32 %v455, 80.0
        %v459 = vmin.f32 %v456, 80.0
        %v460 = vmin.f32 %v457, 80.0
        %v461 = vmul.f32 %v458, 1.442695
        %v462 = vpow.pop %v461
        %v463 = vmul.f32 %v459, 1.442695
        %v464 = vpow.pop %v463
        %v465 = vmul.f32 %v460, 1.442695
        %v466 = vpow.pop %v465
        %vm467 = vcmp.ge.f32.partialorder %v394, 0.0
        %vm468 = vcmp.ge.f32.partialorder %v399, 0.0
        %vm469 = vcmp.ge.f32.partialorder %v404, 0.0
        %v470 = vadd.f32 %v394, 0.5
        %v471 = vadd.f32 %v399, 0.5
        %v472 = vadd.f32 %v404, 0.5
        %v473 = vadd.f32 %v462, 1.0
        %v474 = vadd.f32 %v464, 1.0
        %v475 = vadd.f32 %v466, 1.0
        %v476 = vrcp.pop %v473
        %v477 = vrcp.pop %v474
        %v478 = vrcp.pop %v475
        %v479 = vsel %vm467, %v470, %v476
        %v480 = vsel %vm468, %v471, %v477
        %v481 = vsel %vm469, %v472, %v478
        %v482 = vmul.f32 %v452, %v479
        %v483 = vmul.f32 %v453, %v480
        %v484 = vmul.f32 %v454, %v481
        %v485 = vmul.f32 %v443, 0.5
        %v486 = vmul.f32 %v444, 0.5
        %v487 = vmul.f32 %v445, 0.5
        %v488 = vadd.f32 %v482, %v485
        %v489 = vadd.f32 %v483, %v486
        %v490 = vadd.f32 %v484, %v487
        %491 = vst [vmem:[#allocation3] sm:$0xff] %v443
        %492 = vst [vmem:[#allocation3 + $0x8] sm:$0xff] %v444
        %493 = vst [vmem:[#allocation3 + $0x10] sm:$0xff] %v445
        %494 = vst [vmem:[#allocation4] sm:$0xff] %v488
        %495 = vst [vmem:[#allocation4 + $0x8] sm:$0xff] %v489
        %496 = vst [vmem:[#allocation4 + $0x10] sm:$0xff] %v490
        %v497 = vld [vmem:[#allocation2] sm:$0xff]
        %v498 = vld [vmem:[#allocation3] sm:$0xff]
        %v499 = vmul.f32 %v497, %v498
        %v500 = vld [vmem:[#allocation4] sm:$0xff]
        %v501 = vadd.f32 %v499, %v500
        %502 = vst [vmem:[%s186] sm:$0xff] %v501
        %s503 = scalar_lea.vmem [#allocation3], 8
        %v504 = vld [vmem:[%s503] sm:$0xff]
        %v505 = vmul.f32 %v501, %v504
        %s506 = scalar_lea.vmem [#allocation4], 8
        %v507 = vld [vmem:[%s506] sm:$0xff]
        %v508 = vadd.f32 %v505, %v507
        %s509 = scalar_lea.vmem %s186, 8 [#allocation5]
        %510 = vst [vmem:[%s509] sm:$0xff] %v508
        %s511 = scalar_lea.vmem [#allocation3], 16
        %v512 = vld [vmem:[%s511] sm:$0xff]
        %v513 = vmul.f32 %v508, %v512
        %s514 = scalar_lea.vmem [#allocation4], 16
        %v515 = vld [vmem:[%s514] sm:$0xff]
        %v516 = vadd.f32 %v513, %v515
        %s517 = scalar_lea.vmem %s186, 16 [#allocation5]
        %518 = vst [vmem:[%s517] sm:$0xff] %v516
        %519 = vst [vmem:[#allocation2] sm:$0xff] %v516
        %s520 = sand.u32 %s109, 1
        %s521 = scalar_lea.sflag [#allocation6], %s520
        %s522 = sand.u32 %s109, 1
        %s523 = smul.addr %s522, 24
        %s524 = scalar_lea.vmem [#allocation5], %s523
        // Predicated region
        $region37: #{tpu_custom_call.1} parent=31 // pred_check
          %p525 = pneg %p119
        $region38: #{tpu_custom_call.1} parent=31 // pred_check_branch
          %527 = sbr.rel (%p525) target = $region40
        $region39: #{tpu_custom_call.1} parent=31 // pred_region
          %s528 = smul.u32 3, %s22
          %s530 = ssub.s32 384, 384
          %531 = vsyncadd %s521, %s530
          %s532 = sadd.s32 %s21, %s528
          %s533 = smul.addr %s532, 128
          %s534 = scalar_lea.hbm %s3, %s533
          %s535 = sshll.u32 %s524, 4
          %s536 = int_to_ptr.vmem [resolvable:$true] %s535
          %541 = dma.vmem_to_hbm [thread:$0]  %s536, 384, %s534, %s521, 128, 128, 8
        $region40: #{tpu_custom_call.1} parent=31 // pred_fallthru
          _
      $region32: #{tpu_custom_call.1} parent=5 // pred_fallthru
        _
      %p542 = scmp.le.s32.totalorder 2, %s12
      // Predicated region
      $region41: #{tpu_custom_call.1} parent=5 // pred_check
        %p543 = pneg %p542
      $region42: #{tpu_custom_call.1} parent=5 // pred_check_branch
        %545 = sbr.rel (%p543) target = $region44
      $region43: #{tpu_custom_call.1} parent=5 // pred_region
        %s546 = ssub.s32 %s12, 2
        // Predicated region
        $region45: #{tpu_custom_call.1} parent=43 // pred_check
          %p547 = pneg %p125
        $region46: #{tpu_custom_call.1} parent=43 // pred_check_branch
          %549 = sbr.rel (%p547) target = $region48
        $region47: #{tpu_custom_call.1} parent=43 // pred_region
          %s550 = sand.u32 %s110, 1
          %s551 = scalar_lea.sflag [#allocation6], %s550
          %s552 = sand.u32 %s110, 1
          %s553 = smul.addr %s552, 24
          %s554 = scalar_lea.vmem [#allocation5], %s553
          %555 = dma.done %s551, 384
        $region48: #{tpu_custom_call.1} parent=43 // pred_fallthru
          _
      $region44: #{tpu_custom_call.1} parent=5 // pred_fallthru
        _
    $region6: #{tpu_custom_call.1} parent=1 // loop_footer
      %s16 = sadd.s32 1, %s12
    $region7: #{tpu_custom_call.1} parent=1 // loop_footer_branch
      %11 = sbr.rel target = $region3
    $region8: #{tpu_custom_call.1} parent=1 // loop_exit
      _
    %556 = vsyncpa [#allocation6], 1
    %s557 = scalar_lea.sflag [#allocation6], 1
    %558 = vsyncpa %s557, 1

</llo_original>
